<compile_context>
chip_gen: v7x
topology: tpu7x:2x2x1
jax: 0.10.0
libtpu: 0.0.40
codegen_flags: <defaults>
</compile_context>

<pallas_src>
import functools

import jax
import jax.numpy as jnp
from jax.experimental import pallas as pl
from jax.experimental.pallas import tpu as pltpu


def _jsd_kernel(p_ref, q_ref, out_ref, acc_ref, *, n_rows, tile_rows, steps):
    c = pl.program_id(0)          # parallel axis (megacore split)
    k = pl.program_id(1)          # arbitrary (reduction) axis

    @pl.when(k == 0)
    def _init():
        acc_ref[...] = jnp.zeros_like(acc_ref)

    # Logical (unclamped) row-block index for this step; used for masking.
    blk = c * steps + k
    row0 = blk * tile_rows
    rows = row0 + jax.lax.broadcasted_iota(jnp.int32, p_ref.shape, 0)
    valid = rows < n_rows

    # Mask BEFORE the transcendentals: padded / out-of-range rows become
    # p = q = 1  ->  contribution exactly 0.
    p = jnp.where(valid, p_ref[...].astype(jnp.float32), 1.0)
    q = jnp.where(valid, q_ref[...].astype(jnp.float32), 1.0)

    s = p + q
    inv_s = 1.0 / s                       # exact reciprocal (EUP)
    # p*log(2p/(p+q)) + q*log(2q/(p+q))  ==  p*(log p - log m) + q*(log q - log m)
    contrib = p * jnp.log(2.0 * p * inv_s) + q * jnp.log(2.0 * q * inv_s)

    # Fold the (tile_rows, D) tile into the (8, D) vector accumulator with
    # plain VPU adds; no cross-lane reduce on the hot path.
    tr, d = contrib.shape
    acc_ref[...] += jnp.sum(contrib.reshape(tr // 8, 8, d), axis=0)

    @pl.when(k == pl.num_programs(1) - 1)
    def _finalize():
        # Single cross-lane/sublane reduce per core.
        out_ref[0, 0] = 0.5 * jnp.sum(acc_ref[...]) / jnp.float32(n_rows)


def jsd(p, q, *, target_block_bytes=4 << 20, num_parallel=2):
    """Pallas JSD. p, q: identical shapes; last dim is the class dim."""
    d = p.shape[-1]
    p2 = p.reshape(-1, d)
    q2 = q.reshape(-1, d)
    n_rows = p2.shape[0]

    # --- choose the row tile: ~target_block_bytes per input block ----------
    itemsize = jnp.dtype(p2.dtype).itemsize
    bytes_per_row = d * itemsize
    sub = 16 if itemsize == 2 else 8              # sublane packing (bf16 vs f32)
    tile_rows = max(sub, (target_block_bytes // bytes_per_row) // sub * sub)
    tile_rows = min(tile_rows, pl.cdiv(n_rows, sub) * sub)
    # TODO(synk): for vocab-sized D the (>=8, D) block may exceed VMEM; add a
    # second grid axis tiling D in multiples of 128 in that case.

    n_blocks = pl.cdiv(n_rows, tile_rows)
    n_par = min(num_parallel, n_blocks)           # split across TensorCores (v7x)
    steps = pl.cdiv(n_blocks, n_par)
    max_blk = n_blocks - 1

    def row_block(c, k):
        # Clamp so the DMA never goes out of bounds; fully-out-of-range
        # logical blocks are zeroed by the in-kernel mask.
        return (jnp.minimum(c * steps + k, max_blk), 0)

    block_bytes = tile_rows * d * itemsize
    vmem_limit = max(32 << 20, 4 * block_bytes + 8 * d * 4 + (8 << 20))

    kernel = functools.partial(
        _jsd_kernel, n_rows=n_rows, tile_rows=tile_rows, steps=steps
    )

    partials = pl.pallas_call(
        kernel,
        out_shape=jax.ShapeDtypeStruct((n_par, 1), jnp.float32),
        grid_spec=pltpu.PrefetchScalarGridSpec(
            num_scalar_prefetch=0,
            grid=(n_par, steps),
            in_specs=[
                pl.BlockSpec((tile_rows, d), row_block),
                pl.BlockSpec((tile_rows, d), row_block),
            ],
            out_specs=pl.BlockSpec(
                (1, 1), lambda c, k: (c, 0), memory_space=pltpu.SMEM
            ),
            scratch_shapes=[pltpu.VMEM((8, d), jnp.float32)],
        ),
        compiler_params=pltpu.CompilerParams(
            dimension_semantics=("parallel", "arbitrary"),
            vmem_limit_bytes=int(vmem_limit),
        ),
    )(p2, q2)

    # Per-core partials are already 0.5 * sum / N, so a plain sum combines them.
    return jnp.sum(partials)


def _jsd_ref(p, q):
    """Pure-JAX reference matching the PyTorch module."""
    d = p.shape[-1]
    p2 = p.reshape(-1, d).astype(jnp.float32)
    q2 = q.reshape(-1, d).astype(jnp.float32)
    n = p2.shape[0]
    m = jnp.log(0.5 * (p2 + q2))
    kl_pm = jnp.sum(p2 * (jnp.log(p2) - m)) / n
    kl_qm = jnp.sum(q2 * (jnp.log(q2) - m)) / n
    return 0.5 * (kl_pm + kl_qm)


if __name__ == "__main__":
    key = jax.random.PRNGKey(0)
    k1, k2 = jax.random.split(key)

    # Small shapes: batch=4, seq=8, classes=128 -> flattened (32, 128)
    logits_p = jax.random.normal(k1, (4, 8, 128), dtype=jnp.float32)
    logits_q = jax.random.normal(k2, (4, 8, 128), dtype=jnp.float32)
    p = jax.nn.softmax(logits_p, axis=-1)
    q = jax.nn.softmax(logits_q, axis=-1)

    out = jsd(p, q)
    jax.block_until_ready(out)
    ref = _jsd_ref(p, q)
    assert jnp.allclose(out, ref, rtol=1e-5, atol=1e-6), (out, ref)

    # Second check: odd row count (21) and D=160 with a tiny block budget to
    # exercise the multi-block grid, tail masking and the 2-way parallel split.
    logits_p2 = jax.random.normal(k1, (3, 7, 160), dtype=jnp.float32)
    logits_q2 = jax.random.normal(k2, (3, 7, 160), dtype=jnp.float32)
    p_b = jax.nn.softmax(logits_p2, axis=-1)
    q_b = jax.nn.softmax(logits_q2, axis=-1)
    out2 = jsd(p_b, q_b, target_block_bytes=4096)
    jax.block_until_ready(out2)
    ref2 = _jsd_ref(p_b, q_b)
    assert jnp.allclose(out2, ref2, rtol=1e-5, atol=1e-6), (out2, ref2)

    print("KERNEL_OK")
</pallas_src>

<mosaic_0001>
module attributes {stable_mosaic.version = 11 : i64} {
  func.func @_jsd_kernel(%arg0: i32, %arg1: i32, %arg2: memref<32x128xf32, #tpu.memory_space<vmem>>, %arg3: memref<32x128xf32, #tpu.memory_space<vmem>>, %arg4: memref<1x1xf32, #tpu.memory_space<smem>>, %arg5: memref<8x128xf32, #tpu.memory_space<vmem>>) attributes {dimension_semantics = [#tpu.dimension_semantics<parallel>, #tpu.dimension_semantics<arbitrary>], iteration_bounds = array<i64: 1, 1>, scalar_prefetch = 0 : i64, scratch_operands = 1 : i64, tpu.core_type = #tpu.core_type<tc>, window_params = [{transform_indices = @transform_0, window_bounds = array<i64: 32, 128>}, {transform_indices = @transform_1, window_bounds = array<i64: 32, 128>}, {transform_indices = @transform_2, window_bounds = array<i64: 1, 1>}]} {
    %c0_i32 = arith.constant 0 : i32
    %0 = arith.cmpi eq, %arg1, %c0_i32 : i32
    %1 = arith.extui %0 : i1 to i32
    %c0_i32_0 = arith.constant 0 : i32
    %2 = arith.cmpi ne, %1, %c0_i32_0 : i32
    scf.if %2 {
      %cst_16 = arith.constant 0.000000e+00 : f32
      %39 = vector.broadcast %cst_16 : f32 to vector<8x128xf32>
      %c0_17 = arith.constant 0 : index
      %c0_18 = arith.constant 0 : index
      %40 = vector.load %arg5[%c0_17, %c0_18] : memref<8x128xf32, #tpu.memory_space<vmem>>, vector<8x128xf32>
      tpu.vector_store %arg5[%c0_17, %c0_18], %39 {strides = array<i32>} : memref<8x128xf32, #tpu.memory_space<vmem>>, vector<8x128xf32>,
    } else {
    }
    %c1_i32 = arith.constant 1 : i32
    %3 = arith.muli %arg0, %c1_i32 : i32
    %4 = arith.addi %3, %arg1 : i32
    %c32_i32 = arith.constant 32 : i32
    %5 = arith.muli %4, %c32_i32 : i32
    %6 = tpu.iota {dimensions = array<i32: 0>} : vector<32x128xi32>
    %7 = vector.broadcast %5 : i32 to vector<32x128xi32>
    %8 = arith.addi %7, %6 : vector<32x128xi32>
    %c32_i32_1 = arith.constant 32 : i32
    %9 = vector.broadcast %c32_i32_1 : i32 to vector<32x128xi32>
    %10 = arith.cmpi slt, %8, %9 : vector<32x128xi32>
    %c0 = arith.constant 0 : index
    %c0_2 = arith.constant 0 : index
    %11 = vector.load %arg2[%c0, %c0_2] : memref<32x128xf32, #tpu.memory_space<vmem>>, vector<32x128xf32>
    %cst = arith.constant 1.000000e+00 : f32
    %12 = vector.broadcast %cst : f32 to vector<32x128xf32>
    %13 = arith.select %10, %11, %12 : vector<32x128xi1>, vector<32x128xf32>
    %c0_3 = arith.constant 0 : index
    %c0_4 = arith.constant 0 : index
    %14 = vector.load %arg3[%c0_3, %c0_4] : memref<32x128xf32, #tpu.memory_space<vmem>>, vector<32x128xf32>
    %cst_5 = arith.constant 1.000000e+00 : f32
    %15 = vector.broadcast %cst_5 : f32 to vector<32x128xf32>
    %16 = arith.select %10, %14, %15 : vector<32x128xi1>, vector<32x128xf32>
    %17 = arith.addf %13, %16 : vector<32x128xf32>
    %cst_6 = arith.constant 1.000000e+00 : f32
    %18 = vector.broadcast %cst_6 : f32 to vector<32x128xf32>
    %19 = arith.divf %18, %17 : vector<32x128xf32>
    %cst_7 = arith.constant 2.000000e+00 : f32
    %20 = vector.broadcast %cst_7 : f32 to vector<32x128xf32>
    %21 = arith.mulf %20, %13 : vector<32x128xf32>
    %22 = arith.mulf %21, %19 : vector<32x128xf32>
    %23 = math.log %22 : vector<32x128xf32>
    %24 = arith.mulf %13, %23 : vector<32x128xf32>
    %cst_8 = arith.constant 2.000000e+00 : f32
    %25 = vector.broadcast %cst_8 : f32 to vector<32x128xf32>
    %26 = arith.mulf %25, %16 : vector<32x128xf32>
    %27 = arith.mulf %26, %19 : vector<32x128xf32>
    %28 = math.log %27 : vector<32x128xf32>
    %29 = arith.mulf %16, %28 : vector<32x128xf32>
    %30 = arith.addf %24, %29 : vector<32x128xf32>
    %c0_9 = arith.constant 0 : index
    %c0_10 = arith.constant 0 : index
    %31 = vector.load %arg5[%c0_9, %c0_10] : memref<8x128xf32, #tpu.memory_space<vmem>>, vector<8x128xf32>
    %32 = vector.shape_cast %30 : vector<32x128xf32> to vector<4x8x128xf32>
    %cst_11 = arith.constant dense<0.000000e+00> : vector<8x128xf32>
    %33 = vector.multi_reduction <add>, %32, %cst_11 [0] : vector<4x8x128xf32> to vector<8x128xf32>
    %34 = arith.addf %31, %33 : vector<8x128xf32>
    %c0_12 = arith.constant 0 : index
    %c0_13 = arith.constant 0 : index
    %35 = vector.load %arg5[%c0_12, %c0_13] : memref<8x128xf32, #tpu.memory_space<vmem>>, vector<8x128xf32>
    tpu.vector_store %arg5[%c0_12, %c0_13], %34 {strides = array<i32>} : memref<8x128xf32, #tpu.memory_space<vmem>>, vector<8x128xf32>,
    %c0_i32_14 = arith.constant 0 : i32
    %36 = arith.cmpi eq, %arg1, %c0_i32_14 : i32
    %37 = arith.extui %36 : i1 to i32
    %c0_i32_15 = arith.constant 0 : i32
    %38 = arith.cmpi ne, %37, %c0_i32_15 : i32
    scf.if %38 {
      %c0_16 = arith.constant 0 : index
      %c0_17 = arith.constant 0 : index
      %39 = vector.load %arg5[%c0_16, %c0_17] : memref<8x128xf32, #tpu.memory_space<vmem>>, vector<8x128xf32>
      %40 = vector.shape_cast %39 : vector<8x128xf32> to vector<1x8x128xf32>
      %cst_18 = arith.constant dense<0.000000e+00> : vector<1xf32>
      %41 = vector.multi_reduction <add>, %40, %cst_18 [1, 2] : vector<1x8x128xf32> to vector<1xf32>
      %42 = vector.shape_cast %41 : vector<1xf32> to vector<1x1x1xf32>
      %43 = vector.extract %42[0, 0, 0] : f32 from vector<1x1x1xf32>
      %cst_19 = arith.constant 5.000000e-01 : f32
      %44 = arith.mulf %cst_19, %43 : f32
      %cst_20 = arith.constant 3.200000e+01 : f32
      %45 = arith.divf %44, %cst_20 : f32
      %c0_21 = arith.constant 0 : index
      %c0_22 = arith.constant 0 : index
      %46 = memref.load %arg4[%c0_21, %c0_22] : memref<1x1xf32, #tpu.memory_space<smem>>
      memref.store %45, %arg4[%c0_21, %c0_22] : memref<1x1xf32, #tpu.memory_space<smem>>
    } else {
    }
    return
  }
  func.func @transform_0(%arg0: i32, %arg1: i32) -> (i32, i32) {
    %c1_i32 = arith.constant 1 : i32
    %0 = arith.muli %arg0, %c1_i32 : i32
    %1 = arith.addi %0, %arg1 : i32
    %c0_i32 = arith.constant 0 : i32
    %2 = arith.minsi %1, %c0_i32 : i32
    %c0_i32_0 = arith.constant 0 : i32
    %c0_i32_1 = arith.constant 0 : i32
    return %2, %c0_i32_0 : i32, i32
  }
  func.func @transform_1(%arg0: i32, %arg1: i32) -> (i32, i32) {
    %c1_i32 = arith.constant 1 : i32
    %0 = arith.muli %arg0, %c1_i32 : i32
    %1 = arith.addi %0, %arg1 : i32
    %c0_i32 = arith.constant 0 : i32
    %2 = arith.minsi %1, %c0_i32 : i32
    %c0_i32_0 = arith.constant 0 : i32
    %c0_i32_1 = arith.constant 0 : i32
    return %2, %c0_i32_0 : i32, i32
  }
  func.func @transform_2(%arg0: i32, %arg1: i32) -> (i32, i32) {
    %c0_i32 = arith.constant 0 : i32
    %c0_i32_0 = arith.constant 0 : i32
    return %arg0, %c0_i32 : i32, i32
  }
}

</mosaic_0001>

<llo_original>
// kernel: tpu_custom_call.1
$region0: #{tpu_custom_call.1}
  #allocation0 [shape = 'u32[]', space=smem, size = 0x4, offset = 0x4, fixed_abs, tag = 'smem constant byte address 0x4 - core index']
  #allocation1 [shape = 'u32[144,128]{1,0:T(1,128)}', space=vmem, size = 0x12000, scoped, tag = 'internal scratch']
  #allocation2 [shape = 'f32[8,128]{1,0:T(8,128)}', space=vmem, size = 0x1000, scoped, tag = 'scratch operand']
  %s0 = inlined_call_operand.hbm [shape: f32[32,128], index: 0, kind: input, shape index: {}]
  %s1 = inlined_call_operand.hbm [shape: f32[32,128], index: 1, kind: input, shape index: {}]
  %s2 = inlined_call_operand.hbm [shape: f32[1,1], index: 2, kind: output, shape index: {}]
  %s3 = sld [smem:[#allocation0]]
  $region34: #{tpu_custom_call.1} parent=0
    _
  %s5 = ssub.s32 1, %s3
  %s6 = scalar_select 0, %s5, %s3
  $region1: #{tpu_custom_call.1} parent=0
    #allocation3 [shape = 'u8[16384]{0}', space=vmem, size = 0x4000, scoped, tag = 'input window, operand 0, single buffered']
    #allocation4 [shape = 's32[1]{0}', space=sflag, size = 0x4, scoped, tag = 'scoped memory for tpu_custom_call.1']
    #allocation5 [shape = 's32[1]{0}', space=sflag, size = 0x4, scoped, tag = 'scoped memory for tpu_custom_call.1']
    #allocation6 [shape = 'u8[16384]{0}', space=vmem, size = 0x4000, scoped, tag = 'input window, operand 1, single buffered']
    #allocation7 [shape = 's32[1]{0}', space=sflag, size = 0x4, scoped, tag = 'scoped memory for tpu_custom_call.1']
    #allocation8 [shape = 'u8[512]{0}', space=smem, size = 0x200, scoped, tag = 'output window, operand 0, single buffered']
    %7 = vsyncpa [#allocation4], 0
    %8 = vsyncpa [#allocation7], 0
    %9 = vsyncpa [#allocation5], 0
    // Predicated region
    $region2: #{tpu_custom_call.1} parent=1 // pred_check
      _
    $region3: #{tpu_custom_call.1} parent=1 // pred_check_branch
      %11 = sbr.rel (0) target = $region5
    $region4: #{tpu_custom_call.1} parent=1 // pred_region
      %s12 = sadd.s32 0, 0
      %p13 = scmp.lt.s32.totalorder %s12, 0
      %s14 = scalar_select %p13, %s12, 0
      %s15 = smul.u32 4, %s14
      %s17 = ssub.s32 512, 512
      %18 = vsyncadd [#allocation4], %s17
      %s19 = smul.addr %s15, 128
      %s20 = scalar_lea.hbm %s0, %s19
      %s21 = sshll.u32 [#allocation3], 4
      %s22 = int_to_ptr.vmem [resolvable:$true] %s21
      %27 = dma.hbm_to_vmem [thread:$0]  %s20, 512, %s22, [#allocation4], 128, 128, 8
    $region5: #{tpu_custom_call.1} parent=1 // pred_fallthru
      _
    // Predicated region
    $region6: #{tpu_custom_call.1} parent=1 // pred_check
      _
    $region7: #{tpu_custom_call.1} parent=1 // pred_check_branch
      %29 = sbr.rel (0) target = $region9
    $region8: #{tpu_custom_call.1} parent=1 // pred_region
      %s30 = sadd.s32 0, 0
      %p31 = scmp.lt.s32.totalorder %s30, 0
      %s32 = scalar_select %p31, %s30, 0
      %s33 = smul.u32 4, %s32
      %s35 = ssub.s32 512, 512
      %36 = vsyncadd [#allocation7], %s35
      %s37 = smul.addr %s33, 128
      %s38 = scalar_lea.hbm %s1, %s37
      %s39 = sshll.u32 [#allocation6], 4
      %s40 = int_to_ptr.vmem [resolvable:$true] %s39
      %45 = dma.hbm_to_vmem [thread:$0]  %s38, 512, %s40, [#allocation7], 128, 128, 8
    $region9: #{tpu_custom_call.1} parent=1 // pred_fallthru
      _
    // Predicated region
    $region10: #{tpu_custom_call.1} parent=1 // pred_check
      _
    $region11: #{tpu_custom_call.1} parent=1 // pred_check_branch
      %47 = sbr.rel (0) target = $region13
    $region12: #{tpu_custom_call.1} parent=1 // pred_region
      %48 = dma.done [#allocation4], 512
    $region13: #{tpu_custom_call.1} parent=1 // pred_fallthru
      _
    // Predicated region
    $region14: #{tpu_custom_call.1} parent=1 // pred_check
      _
    $region15: #{tpu_custom_call.1} parent=1 // pred_check_branch
      %50 = sbr.rel (0) target = $region17
    $region16: #{tpu_custom_call.1} parent=1 // pred_region
      %51 = dma.done [#allocation7], 512
    $region17: #{tpu_custom_call.1} parent=1 // pred_fallthru
      _
    %s52 = sadd.s32 0, 0
    %p53 = scmp.lt.s32.totalorder %s52, 0
    %s54 = scalar_select %p53, %s52, 0
    %s55 = smul.u32 4, %s54
    %s56 = sadd.s32 0, 0
    %p57 = scmp.lt.s32.totalorder %s56, 0
    %s58 = scalar_select %p57, %s56, 0
    %s59 = smul.u32 4, %s58
    %p60 = scmp.eq.s32.totalorder 0, 0
    // Predicated region
    $region18: #{tpu_custom_call.1} parent=1 // pred_check
      %p61 = pneg %p60
    $region19: #{tpu_custom_call.1} parent=1 // pred_check_branch
      %63 = sbr.rel (%p61) target = $region21
    $region20: #{tpu_custom_call.1} parent=1 // pred_region
      %64 = vst [vmem:[#allocation2] sm:$0xff] 0.0
    $region21: #{tpu_custom_call.1} parent=1 // pred_fallthru
      _
    %s65 = sadd.s32 0, 0
    %s66 = smul.u32 %s65, 32
    %v67 = vlaneseq
    %v68 = vshrl.u32 %v67, 7
    %v69 = vadd.s32 %v68, 8
    %v70 = vadd.s32 %v68, 16
    %v71 = vadd.s32 %v68, 24
    %v72 = vstv %s66
    %v73 = vadd.s32 %v72, %v68
    %v74 = vadd.s32 %v72, %v69
    %v75 = vadd.s32 %v72, %v70
    %v76 = vadd.s32 %v72, %v71
    %vm77 = vcmp.lt.s32.totalorder %v73, 32
    %vm78 = vcmp.lt.s32.totalorder %v74, 32
    %vm79 = vcmp.lt.s32.totalorder %v75, 32
    %vm80 = vcmp.lt.s32.totalorder %v76, 32
    %v81 = vld [vmem:[#allocation3] sm:$0xff]
    %v82 = vld [vmem:[#allocation3 + $0x8] sm:$0xff]
    %v83 = vld [vmem:[#allocation3 + $0x10] sm:$0xff]
    %v84 = vld [vmem:[#allocation3 + $0x18] sm:$0xff]
    %v85 = vsel %vm77, %v81, 1.0
    %v86 = vsel %vm78, %v82, 1.0
    %v87 = vsel %vm79, %v83, 1.0
    %v88 = vsel %vm80, %v84, 1.0
    %v89 = vld [vmem:[#allocation6] sm:$0xff]
    %v90 = vld [vmem:[#allocation6 + $0x8] sm:$0xff]
    %v91 = vld [vmem:[#allocation6 + $0x10] sm:$0xff]
    %v92 = vld [vmem:[#allocation6 + $0x18] sm:$0xff]
    %v93 = vsel %vm77, %v89, 1.0
    %v94 = vsel %vm78, %v90, 1.0
    %v95 = vsel %vm79, %v91, 1.0
    %v96 = vsel %vm80, %v92, 1.0
    %v97 = vadd.f32 %v85, %v93
    %v98 = vadd.f32 %v86, %v94
    %v99 = vadd.f32 %v87, %v95
    %v100 = vadd.f32 %v88, %v96
    %v101 = vrcp.pop %v97
    %v102 = vmul.f32 1.0, %v101
    %v103 = vrcp.pop %v98
    %v104 = vmul.f32 1.0, %v103
    %v105 = vrcp.pop %v99
    %v106 = vmul.f32 1.0, %v105
    %v107 = vrcp.pop %v100
    %v108 = vmul.f32 1.0, %v107
    %v109 = vmul.f32 %v85, 2.0
    %v110 = vmul.f32 %v86, 2.0
    %v111 = vmul.f32 %v87, 2.0
    %v112 = vmul.f32 %v88, 2.0
    %v113 = vmul.f32 %v109, %v102
    %v114 = vmul.f32 %v110, %v104
    %v115 = vmul.f32 %v111, %v106
    %v116 = vmul.f32 %v112, %v108
    %v117 = vlog2.pop %v113
    %v118 = vmul.f32 %v117, 0.6931472
    %v119 = vlog2.pop %v114
    %v120 = vmul.f32 %v119, 0.6931472
    %v121 = vlog2.pop %v115
    %v122 = vmul.f32 %v121, 0.6931472
    %v123 = vlog2.pop %v116
    %v124 = vmul.f32 %v123, 0.6931472
    %v125 = vmul.f32 %v85, %v118
    %v126 = vmul.f32 %v86, %v120
    %v127 = vmul.f32 %v87, %v122
    %v128 = vmul.f32 %v88, %v124
    %v129 = vmul.f32 %v93, 2.0
    %v130 = vmul.f32 %v94, 2.0
    %v131 = vmul.f32 %v95, 2.0
    %v132 = vmul.f32 %v96, 2.0
    %v133 = vmul.f32 %v129, %v102
    %v134 = vmul.f32 %v130, %v104
    %v135 = vmul.f32 %v131, %v106
    %v136 = vmul.f32 %v132, %v108
    %v137 = vlog2.pop %v133
    %v138 = vmul.f32 %v137, 0.6931472
    %v139 = vlog2.pop %v134
    %v140 = vmul.f32 %v139, 0.6931472
    %v141 = vlog2.pop %v135
    %v142 = vmul.f32 %v141, 0.6931472
    %v143 = vlog2.pop %v136
    %v144 = vmul.f32 %v143, 0.6931472
    %v145 = vmul.f32 %v93, %v138
    %v146 = vmul.f32 %v94, %v140
    %v147 = vmul.f32 %v95, %v142
    %v148 = vmul.f32 %v96, %v144
    %v149 = vadd.f32 %v125, %v145
    %v150 = vadd.f32 %v126, %v146
    %v151 = vadd.f32 %v127, %v147
    %v152 = vadd.f32 %v128, %v148
    %v153 = vld [vmem:[#allocation2] sm:$0xff]
    %v154 = vadd.f32 %v149, %v150
    %v155 = vadd.f32 %v154, %v151
    %v156 = vadd.f32 %v155, %v152
    %v157 = vadd.f32 %v153, %v156
    %158 = vst [vmem:[#allocation2] sm:$0xff] %v157
    // Predicated region
    $region22: #{tpu_custom_call.1} parent=1 // pred_check
      %p159 = pneg %p60
    $region23: #{tpu_custom_call.1} parent=1 // pred_check_branch
      %161 = sbr.rel (%p159) target = $region25
    $region24: #{tpu_custom_call.1} parent=1 // pred_region
      %v162 = vld [vmem:[#allocation2] sm:$0xff]
      %163 = vadd.xlane.f32.xlu0 %v162
      %v164 = vpop.xlane.xlu0 %163
      %v165 = vrot.slane %v164, 4
      %v166 = vadd.f32 %v164, %v165
      %v167 = vrot.slane %v166, 2
      %v168 = vadd.f32 %v166, %v167
      %v169 = vrot.slane %v168, 1
      %v170 = vadd.f32 %v168, %v169
      %s171 = vtos %v170
      %s172 = smul.f32 %s171, 0.5
      %v173 = vrcp.pop 32.0
      %s174 = vtos %v173
      %s175 = smul.f32 %s172, %s174
      %s176 = scalar_lea.smem [#allocation8], 0
      %177 = sst [smem:[%s176]] %s175
    $region25: #{tpu_custom_call.1} parent=1 // pred_fallthru
      _
    // Predicated region
    $region26: #{tpu_custom_call.1} parent=1 // pred_check
      _
    $region27: #{tpu_custom_call.1} parent=1 // pred_check_branch
      %179 = sbr.rel (0) target = $region29
    $region28: #{tpu_custom_call.1} parent=1 // pred_region
      %s181 = ssub.s32 16, 16
      %182 = vsyncadd [#allocation5], %s181
      %185 = dma.smem_to_hbm [#allocation8], 16, %s2, [#allocation5]
    $region29: #{tpu_custom_call.1} parent=1 // pred_fallthru
      _
    // Predicated region
    $region30: #{tpu_custom_call.1} parent=1 // pred_check
      _
    $region31: #{tpu_custom_call.1} parent=1 // pred_check_branch
      %187 = sbr.rel (0) target = $region33
    $region32: #{tpu_custom_call.1} parent=1 // pred_region
      %188 = dma.done [#allocation5], 16
    $region33: #{tpu_custom_call.1} parent=1 // pred_fallthru
      _
    %189 = sfence
    %190 = vsyncpa [#allocation4], 1
    %191 = vsyncpa [#allocation7], 1
    %192 = vsyncpa [#allocation5], 1

</llo_original>
